<compile_context>
chip_gen: v6e
topology: v6e:2x2x1
jax: 0.10.0
libtpu: 0.0.40
codegen_flags: <defaults>
</compile_context>

<pallas_src>
import functools

import jax
import jax.numpy as jnp
from jax.experimental import pallas as pl
from jax.experimental.pallas import tpu as pltpu


_LANE = 128
_SUBLANE = 8
_VMEM_LIMIT_BYTES = 32 * 1024 * 1024   # explicit scoped-VMEM limit; fits v5e/v6e/v7x
_VMEM_BUDGET_BYTES = 24 * 1024 * 1024  # target double-buffered working-set size


def _round_up(x, m):
    return (x + m - 1) // m * m


def _smear_kernel(dist_ref, offset_ref, out_ref, *, coeff):
    # NG path: dist (TN, 1) - offset (1, G) -> (TN, G)
    # GN path: dist (1, TN) - offset (G, 1) -> (G, TN)
    # (d - off)^2 == (off - d)^2, so the broadcast orientation is irrelevant.
    diff = dist_ref[...] - offset_ref[...]            # f32
    out_ref[...] = jnp.exp(coeff * diff * diff).astype(out_ref.dtype)


def gaussian_smearing(dist, offset, coeff, *,
                      out_dtype=jnp.float32,
                      lane_dense=False):
    """Pallas implementation of GaussianSmearing.forward.

    Args:
      dist:    any-shaped float array of distances (flattened to N = dist.size).
      offset:  (num_gaussians,) gaussian centers.
      coeff:   python float, -0.5 / (offset[1]-offset[0])**2 (static, as in the
               nn.Module).
      out_dtype:  output dtype (f32 default matches the module; bf16 halves the
                  HBM write bytes — use a looser tolerance when comparing).
      lane_dense: if True, return (num_gaussians, N) with N on lanes. This is
                  the preferred layout when the consumer can accept the
                  transpose: unmasked, fully lane-dense compute and stores.

    Returns:
      (N, num_gaussians) array by default (module semantics), or
      (num_gaussians, N) if lane_dense.
    """
    g = int(offset.shape[0])
    n = int(dist.size)
    coeff = float(coeff)
    out_itemsize = jnp.dtype(out_dtype).itemsize

    if n == 0:  # empty-input guard (would otherwise produce a zero-size grid)
        shape = (g, 0) if lane_dense else (0, g)
        return jnp.zeros(shape, dtype=out_dtype)

    dist_flat = dist.reshape(-1).astype(jnp.float32)
    offset_f32 = offset.astype(jnp.float32)

    # --- VMEM budgeting (per N element, padded VMEM footprint, double-buffered)
    if lane_dense:
        align = _LANE
        dist_bytes = _SUBLANE * 4                        # (1, TN) f32: 1 -> 8 sublanes
        g_pad = _round_up(g, 16 if out_itemsize < 4 else _SUBLANE)
        out_bytes = g_pad * out_itemsize                 # (G, TN): G sublane-padded
    else:
        align = _SUBLANE
        dist_bytes = _LANE * 4                           # (TN, 1) f32: 1 -> 128 lanes
        out_bytes = _round_up(g, _LANE) * out_itemsize   # (TN, G): G lane-padded
    per_elem = 2 * (dist_bytes + out_bytes)              # x2 for double buffering

    tile_budget = max(align, (_VMEM_BUDGET_BYTES // per_elem) // align * align)
    num_tiles = pl.cdiv(n, tile_budget)
    if n > align:
        # Keep >= 2 grid steps so v7x megacore can shard the "parallel" axis;
        # also balances the ragged last block.
        num_tiles = max(num_tiles, 2)
    tile_n = min(tile_budget, _round_up(pl.cdiv(n, num_tiles), align))
    grid = (pl.cdiv(n, tile_n),)   # ragged last block: Pallas masks OOB writes

    kernel = functools.partial(_smear_kernel, coeff=coeff)
    cost = pl.CostEstimate(
        flops=3 * n * g,
        transcendentals=n * g,
        bytes_accessed=4 * n + 4 * g + n * g * out_itemsize,
    )

    if lane_dense:
        dist_in = dist_flat.reshape(1, n)                 # N on lanes
        offset_in = offset_f32.reshape(g, 1)              # G on sublanes
        in_specs = [
            pl.BlockSpec((1, tile_n), lambda i: (0, i)),  # lane-dense dist tile
            pl.BlockSpec((g, 1), lambda i: (0, 0)),       # resident offsets
        ]
        out_specs = pl.BlockSpec((g, tile_n), lambda i: (0, i))
        out_shape = jax.ShapeDtypeStruct((g, n), out_dtype)
    else:
        dist_in = dist_flat.reshape(n, 1)                 # N on sublanes
        offset_in = offset_f32.reshape(1, g)              # G on lanes
        in_specs = [
            pl.BlockSpec((tile_n, 1), lambda i: (i, 0)),  # dist column tile
            pl.BlockSpec((1, g), lambda i: (0, 0)),       # resident offsets
        ]
        out_specs = pl.BlockSpec((tile_n, g), lambda i: (i, 0))
        out_shape = jax.ShapeDtypeStruct((n, g), out_dtype)

    return pl.pallas_call(
        kernel,
        out_shape=out_shape,
        grid_spec=pltpu.PrefetchScalarGridSpec(
            num_scalar_prefetch=0,
            grid=grid,
            in_specs=in_specs,
            out_specs=out_specs,
        ),
        compiler_params=pltpu.CompilerParams(
            dimension_semantics=("parallel",),
            vmem_limit_bytes=_VMEM_LIMIT_BYTES,
        ),
        cost_estimate=cost,
    )(dist_in, offset_in)


def make_gaussian_smearing_params(start=0.0, stop=10.0, num_gaussians=50):
    offset = jnp.linspace(start, stop, num_gaussians, dtype=jnp.float32)
    delta = (stop - start) / (num_gaussians - 1)
    coeff = -0.5 / (delta ** 2)
    return offset, coeff


if __name__ == "__main__":
    # Deterministic parameters (matches nn.Module __init__ defaults).
    start, stop, num_gaussians = 0.0, 10.0, 50
    offset, coeff = make_gaussian_smearing_params(start, stop, num_gaussians)

    key = jax.random.PRNGKey(0)
    k1, k2 = jax.random.split(key)

    # Aligned case: a (2, 64) batch of distances -> N = 128.
    dist_a = jax.random.uniform(k1, (2, 64), dtype=jnp.float32) * 10.0
    # Ragged case: N = 111 (not a multiple of 8 or 128) -> exercises masked
    # last blocks with no wrapper padding / slicing.
    dist_b = jax.random.uniform(k2, (111,), dtype=jnp.float32) * 10.0

    def ref_fn(d):
        # Plain-JAX reference (same math as the PyTorch forward).
        return jnp.exp(coeff * (d.reshape(-1, 1) - offset.reshape(1, -1)) ** 2)

    for dist in (dist_a, dist_b):
        ref = ref_fn(dist)

        # Default (N, G) layout — matches the module's output exactly.
        out_ng = jax.block_until_ready(gaussian_smearing(dist, offset, coeff))
        assert out_ng.shape == (dist.size, num_gaussians), out_ng.shape
        assert jnp.allclose(out_ng, ref, atol=1e-6, rtol=1e-6), "NG mismatch"

        # Lane-dense (G, N) layout — unmasked, fully lane-dense stores.
        out_gn = jax.block_until_ready(
            gaussian_smearing(dist, offset, coeff, lane_dense=True))
        assert out_gn.shape == (num_gaussians, dist.size), out_gn.shape
        assert jnp.allclose(out_gn.T, ref, atol=1e-6, rtol=1e-6), "GN mismatch"

    # bf16-output path (halves HBM write bytes); bf16 needs a loose tolerance.
    out_bf16 = jax.block_until_ready(
        gaussian_smearing(dist_a, offset, coeff,
                          out_dtype=jnp.bfloat16, lane_dense=True))
    assert jnp.allclose(out_bf16.T.astype(jnp.float32), ref_fn(dist_a),
                        atol=1e-2, rtol=1e-2), "bf16 mismatch"

    print("KERNEL_OK")
</pallas_src>

<mosaic_0001>
module attributes {stable_mosaic.version = 11 : i64} {
  func.func @_smear_kernel(%arg0: i32, %arg1: memref<64x1xf32, #tpu.memory_space<vmem>>, %arg2: memref<1x50xf32, #tpu.memory_space<vmem>>, %arg3: memref<64x50xf32, #tpu.memory_space<vmem>>) attributes {dimension_semantics = [#tpu.dimension_semantics<parallel>], iteration_bounds = array<i64: 2>, scalar_prefetch = 0 : i64, scratch_operands = 0 : i64, tpu.core_type = #tpu.core_type<tc>, window_params = [{transform_indices = @transform_0, window_bounds = array<i64: 64, 1>}, {pipeline_mode = #tpu.pipeline_mode<synchronous>, transform_indices = @transform_1, window_bounds = array<i64: 1, 50>}, {transform_indices = @transform_2, window_bounds = array<i64: 64, 50>}]} {
    %c0 = arith.constant 0 : index
    %c0_0 = arith.constant 0 : index
    %0 = vector.load %arg1[%c0, %c0_0] : memref<64x1xf32, #tpu.memory_space<vmem>>, vector<64x1xf32>
    %c0_1 = arith.constant 0 : index
    %c0_2 = arith.constant 0 : index
    %1 = vector.load %arg2[%c0_1, %c0_2] : memref<1x50xf32, #tpu.memory_space<vmem>>, vector<1x50xf32>
    %2 = vector.broadcast %0 : vector<64x1xf32> to vector<64x50xf32>
    %3 = vector.broadcast %1 : vector<1x50xf32> to vector<64x50xf32>
    %4 = arith.subf %2, %3 : vector<64x50xf32>
    %cst = arith.constant -1.200500e+01 : f32
    %5 = vector.broadcast %cst : f32 to vector<64x50xf32>
    %6 = arith.mulf %5, %4 : vector<64x50xf32>
    %7 = arith.mulf %6, %4 : vector<64x50xf32>
    %8 = math.exp %7 : vector<64x50xf32>
    %c0_3 = arith.constant 0 : index
    %c0_4 = arith.constant 0 : index
    %9 = vector.load %arg3[%c0_3, %c0_4] : memref<64x50xf32, #tpu.memory_space<vmem>>, vector<64x50xf32>
    tpu.vector_store %arg3[%c0_3, %c0_4], %8 {strides = array<i32>} : memref<64x50xf32, #tpu.memory_space<vmem>>, vector<64x50xf32>,
    return
  }
  func.func @transform_0(%arg0: i32) -> (i32, i32) {
    %c0_i32 = arith.constant 0 : i32
    %c0_i32_0 = arith.constant 0 : i32
    return %arg0, %c0_i32 : i32, i32
  }
  func.func @transform_1(%arg0: i32) -> (i32, i32) {
    %c0_i32 = arith.constant 0 : i32
    %c0_i32_0 = arith.constant 0 : i32
    %c0_i32_1 = arith.constant 0 : i32
    return %c0_i32, %c0_i32_0 : i32, i32
  }
  func.func @transform_2(%arg0: i32) -> (i32, i32) {
    %c0_i32 = arith.constant 0 : i32
    %c0_i32_0 = arith.constant 0 : i32
    return %arg0, %c0_i32 : i32, i32
  }
}

</mosaic_0001>

<llo_original>
// kernel: tpu_custom_call.1
$region0: #{tpu_custom_call.1}
  #allocation0 [shape = 'u32[]', space=smem, size = 0x4, offset = 0x4, fixed_abs, tag = 'smem constant byte address 0x4 - core index']
  #allocation1 [shape = 'u32[144,128]{1,0:T(1,128)}', space=vmem, size = 0x12000, scoped, tag = 'internal scratch']
  %s0 = inlined_call_operand.vmem [shape: f32[128,1], index: 0, kind: input, shape index: {}]
  %s1 = inlined_call_operand.vmem [shape: f32[1,50], index: 1, kind: input, shape index: {}]
  %s2 = inlined_call_operand.vmem [shape: f32[128,50], index: 2, kind: output, shape index: {}]
  %s3 = sld [smem:[#allocation0]]
  $region41: #{tpu_custom_call.1} parent=0
    _
  %s5 = ssub.s32 1, %s3
  %s6 = scalar_select 0, %s5, %s3
  loop: start=0, step=1, limit=4
  $region2: #{tpu_custom_call.1} parent=0 // loop_pre_header
    _
  $region3: #{tpu_custom_call.1} parent=0 // loop_header
    %s8 = sphi 0, %s12
    %p9 = scmp.ge.s32.totalorder %s8, 4
    %s18 = sphi 0, %s20
    %s21 = sphi 0, %s18
    %s22 = sphi 0, %s21
    %s38 = sphi 0, %s22
    %s42 = sphi 0, %s42
    %s44 = sphi 0, %s42
    %s45 = sphi 0, %s44
    %s59 = sphi 0, %s45
    %s65 = sphi 0, %s67
    %s68 = sphi 0, %s65
    %s69 = sphi 0, %s68
    %s85 = sphi 0, %s69
  $region4: #{tpu_custom_call.1} parent=0 // loop_header_branch
    %11 = sbr.rel (%p9) target = $region8
  $region5: #{tpu_custom_call.1} parent=0 // loop_body
    %s13 = ssub.s32 %s8, 1
    %s14 = ssub.s32 %s8, 2
    %s15 = sadd.s32 %s8, 1
    %s16 = ssub.s32 %s8, %s15
    %p17 = scmp.eq.s32.totalorder %s16, 0
    %s19 = sadd.s32 %s18, 1
    %s20 = scalar_select %p17, %s18, %s19
    %p23 = pneg %p17
    %p24 = scmp.eq.s32.totalorder %s8, 1
    %p25 = por %p23, %p24
    %p26 = scmp.ne.s32.totalorder %s18, %s21
    %p27 = scmp.eq.s32.totalorder %s8, 0
    %p28 = por %p26, %p27
    %p29 = scmp.ne.s32.totalorder %s18, %s21
    %p30 = scmp.eq.s32.totalorder %s13, 1
    %p31 = por %p29, %p30
    %p32 = scmp.ne.s32.totalorder %s21, %s22
    %p33 = scmp.eq.s32.totalorder %s13, 0
    %p34 = por %p32, %p33
    %p35 = scmp.ne.s32.totalorder %s21, %s22
    %p36 = scmp.eq.s32.totalorder %s14, 1
    %p37 = por %p35, %p36
    %p39 = scmp.ne.s32.totalorder %s22, %s38
    %p40 = scmp.eq.s32.totalorder %s14, 0
    %p41 = por %p39, %p40
    %s43 = sadd.s32 %s42, 1
    %p46 = scmp.eq.s32.totalorder %s8, 1
    %p47 = scmp.ne.s32.totalorder %s42, %s44
    %p48 = scmp.eq.s32.totalorder %s8, 0
    %p49 = por %p47, %p48
    %p50 = scmp.ne.s32.totalorder %s42, %s44
    %p51 = scmp.eq.s32.totalorder %s13, 1
    %p52 = por %p50, %p51
    %p53 = scmp.ne.s32.totalorder %s44, %s45
    %p54 = scmp.eq.s32.totalorder %s13, 0
    %p55 = por %p53, %p54
    %p56 = scmp.ne.s32.totalorder %s44, %s45
    %p57 = scmp.eq.s32.totalorder %s14, 1
    %p58 = por %p56, %p57
    %p60 = scmp.ne.s32.totalorder %s45, %s59
    %p61 = scmp.eq.s32.totalorder %s14, 0
    %p62 = por %p60, %p61
    %s63 = ssub.s32 %s8, %s15
    %p64 = scmp.eq.s32.totalorder %s63, 0
    %s66 = sadd.s32 %s65, 1
    %s67 = scalar_select %p64, %s65, %s66
    %p70 = pneg %p64
    %p71 = scmp.eq.s32.totalorder %s8, 1
    %p72 = por %p70, %p71
    %p73 = scmp.ne.s32.totalorder %s65, %s68
    %p74 = scmp.eq.s32.totalorder %s8, 0
    %p75 = por %p73, %p74
    %p76 = scmp.ne.s32.totalorder %s65, %s68
    %p77 = scmp.eq.s32.totalorder %s13, 1
    %p78 = por %p76, %p77
    %p79 = scmp.ne.s32.totalorder %s68, %s69
    %p80 = scmp.eq.s32.totalorder %s13, 0
    %p81 = por %p79, %p80
    %p82 = scmp.ne.s32.totalorder %s68, %s69
    %p83 = scmp.eq.s32.totalorder %s14, 1
    %p84 = por %p82, %p83
    %p86 = scmp.ne.s32.totalorder %s69, %s85
    %p87 = scmp.eq.s32.totalorder %s14, 0
    %p88 = por %p86, %p87
    %p89 = scmp.le.s32.totalorder 1, %s8
    %p90 = scmp.lt.s32.totalorder %s8, 3
    %p91 = pnand %p89, %p90
    %p92 = pneg %p91
    // Predicated region
    $region9: #{tpu_custom_call.1} parent=5 // pred_check
      _
    $region10: #{tpu_custom_call.1} parent=5 // pred_check_branch
      %94 = sbr.rel (%p91) target = $region12
    $region11: #{tpu_custom_call.1} parent=5 // pred_region
      %s95 = ssub.s32 %s8, 1
      // Predicated region
      $region13: #{tpu_custom_call.1} parent=11 // pred_check
        %p96 = pneg %p55
      $region14: #{tpu_custom_call.1} parent=11 // pred_check_branch
        %98 = sbr.rel (%p96) target = $region16
      $region15: #{tpu_custom_call.1} parent=11 // pred_region
        _
      $region16: #{tpu_custom_call.1} parent=11 // pred_fallthru
        _
    $region12: #{tpu_custom_call.1} parent=5 // pred_fallthru
      _
    %p99 = scmp.lt.s32.totalorder %s8, 2
    // Predicated region
    $region17: #{tpu_custom_call.1} parent=5 // pred_check
      %p100 = pneg %p99
    $region18: #{tpu_custom_call.1} parent=5 // pred_check_branch
      %102 = sbr.rel (%p100) target = $region20
    $region19: #{tpu_custom_call.1} parent=5 // pred_region
      // Predicated region
      $region21: #{tpu_custom_call.1} parent=19 // pred_check
        %p103 = pneg %p28
      $region22: #{tpu_custom_call.1} parent=19 // pred_check_branch
        %105 = sbr.rel (%p103) target = $region24
      $region23: #{tpu_custom_call.1} parent=19 // pred_region
        %s106 = smul.u32 8, %s8
        %p107 = scmp.lt.s32.totalorder %s106, 15
        %s108 = scalar_select %p107, %s106, 15
        %s109 = smul.addr %s108, 8
        %s110 = scalar_lea.vmem %s0, %s109
        %s111 = smul.u32 8, %s8
      $region24: #{tpu_custom_call.1} parent=19 // pred_fallthru
        _
    $region20: #{tpu_custom_call.1} parent=5 // pred_fallthru
      _
    %p112 = scmp.le.s32.totalorder 1, %s8
    %p113 = scmp.lt.s32.totalorder %s8, 3
    %p114 = pnand %p112, %p113
    %p115 = pneg %p114
    // Predicated region
    $region25: #{tpu_custom_call.1} parent=5 // pred_check
      _
    $region26: #{tpu_custom_call.1} parent=5 // pred_check_branch
      %117 = sbr.rel (%p114) target = $region28
    $region27: #{tpu_custom_call.1} parent=5 // pred_region
      %s118 = ssub.s32 %s8, 1
      %s119 = smul.u32 8, %s13
      %p120 = scmp.lt.s32.totalorder %s119, 15
      %s121 = scalar_select %p120, %s119, 15
      %s122 = smul.addr %s121, 8
      %s123 = scalar_lea.vmem %s0, %s122
      %p124 = pneg %p34
      %p125 = pneg %p31
      %p126 = pneg %p55
      %p127 = pneg %p52
      %p128 = pneg %p81
      %p129 = pneg %p78
      %s130 = smul.u32 8, %s13
      %p131 = scmp.lt.s32.totalorder %s130, 15
      %s132 = scalar_select %p131, %s130, 15
      %s133 = smul.addr %s132, 8
      %s134 = scalar_lea.vmem %s2, %s133
      %s135 = smul.u32 8, %s13
      %p136 = scmp.lt.s32.totalorder %s135, 15
      %s137 = scalar_select %p136, %s135, 15
      %s138 = smul.addr %s137, 8
      %s139 = scalar_lea.vmem %s0, %s138
      %s140 = smul.u32 8, %s13
      %s141 = smul.u32 8, %s13
      %p142 = scmp.lt.s32.totalorder %s141, 15
      %s143 = scalar_select %p142, %s141, 15
      %s144 = smul.addr %s143, 8
      %s145 = scalar_lea.vmem %s2, %s144
      %s146 = smul.u32 8, %s13
      %v147 = vld [vmem:[%s139] sm:$0xff]
      %v148 = vld [vmem:[%s139 + $0x8] sm:$0xff]
      %v149 = vld [vmem:[%s139 + $0x10] sm:$0xff]
      %v150 = vld [vmem:[%s139 + $0x18] sm:$0xff]
      %v151 = vld [vmem:[%s139 + $0x20] sm:$0xff]
      %v152 = vld [vmem:[%s139 + $0x28] sm:$0xff]
      %v153 = vld [vmem:[%s139 + $0x30] sm:$0xff]
      %v154 = vld [vmem:[%s139 + $0x38] sm:$0xff]
      %v155 = vld [vmem:[%s1] sm:$0x1]
      %157 = vset.pattern.permute.xlu0 0
      %158 = vperm.xlu0 %157, %v147
      %v159 = vpop.permute.xlu0 %158
      %162 = vset.pattern.permute.xlu0 0
      %163 = vperm.xlu0 %162, %v148
      %v164 = vpop.permute.xlu0 %163
      %167 = vset.pattern.permute.xlu0 0
      %168 = vperm.xlu0 %167, %v149
      %v169 = vpop.permute.xlu0 %168
      %172 = vset.pattern.permute.xlu0 0
      %173 = vperm.xlu0 %172, %v150
      %v174 = vpop.permute.xlu0 %173
      %177 = vset.pattern.permute.xlu0 0
      %178 = vperm.xlu0 %177, %v151
      %v179 = vpop.permute.xlu0 %178
      %182 = vset.pattern.permute.xlu0 0
      %183 = vperm.xlu0 %182, %v152
      %v184 = vpop.permute.xlu0 %183
      %187 = vset.pattern.permute.xlu0 0
      %188 = vperm.xlu0 %187, %v153
      %v189 = vpop.permute.xlu0 %188
      %192 = vset.pattern.permute.xlu0 0
      %193 = vperm.xlu0 %192, %v154
      %v194 = vpop.permute.xlu0 %193
      %v197 = vlaneseq
      %v198 = vshrl.u32 %v197, 7
      %v199 = vsub.s32 0, %v198
      %v200 = vrot.slane %v155, %v199
      %v202 = vsub.f32 %v159, %v200
      %v203 = vsub.f32 %v164, %v200
      %v204 = vsub.f32 %v169, %v200
      %v205 = vsub.f32 %v174, %v200
      %v206 = vsub.f32 %v179, %v200
      %v207 = vsub.f32 %v184, %v200
      %v208 = vsub.f32 %v189, %v200
      %v209 = vsub.f32 %v194, %v200
      %v210 = vmul.f32 %v202, -12.005
      %v211 = vmul.f32 %v203, -12.005
      %v212 = vmul.f32 %v204, -12.005
      %v213 = vmul.f32 %v205, -12.005
      %v214 = vmul.f32 %v206, -12.005
      %v215 = vmul.f32 %v207, -12.005
      %v216 = vmul.f32 %v208, -12.005
      %v217 = vmul.f32 %v209, -12.005
      %v218 = vmul.f32 %v210, %v202
      %v219 = vmul.f32 %v211, %v203
      %v220 = vmul.f32 %v212, %v204
      %v221 = vmul.f32 %v213, %v205
      %v222 = vmul.f32 %v214, %v206
      %v223 = vmul.f32 %v215, %v207
      %v224 = vmul.f32 %v216, %v208
      %v225 = vmul.f32 %v217, %v209
      %v226 = vmul.f32 %v218, 1.442695
      %v227 = vpow.pop %v226
      %v228 = vmul.f32 %v219, 1.442695
      %v229 = vpow.pop %v228
      %v230 = vmul.f32 %v220, 1.442695
      %v231 = vpow.pop %v230
      %v232 = vmul.f32 %v221, 1.442695
      %v233 = vpow.pop %v232
      %v234 = vmul.f32 %v222, 1.442695
      %v235 = vpow.pop %v234
      %v236 = vmul.f32 %v223, 1.442695
      %v237 = vpow.pop %v236
      %v238 = vmul.f32 %v224, 1.442695
      %v239 = vpow.pop %v238
      %v240 = vmul.f32 %v225, 1.442695
      %v241 = vpow.pop %v240
      %vm242 = vcmask 408576
      %243 = vst.msk [vmem:[%s145] sm:$0xff] %vm242, %v227
      %244 = vst.msk [vmem:[%s145 + $0x8] sm:$0xff] %vm242, %v229
      %245 = vst.msk [vmem:[%s145 + $0x10] sm:$0xff] %vm242, %v231
      %246 = vst.msk [vmem:[%s145 + $0x18] sm:$0xff] %vm242, %v233
      %247 = vst.msk [vmem:[%s145 + $0x20] sm:$0xff] %vm242, %v235
      %248 = vst.msk [vmem:[%s145 + $0x28] sm:$0xff] %vm242, %v237
      %249 = vst.msk [vmem:[%s145 + $0x30] sm:$0xff] %vm242, %v239
      %250 = vst.msk [vmem:[%s145 + $0x38] sm:$0xff] %vm242, %v241
      %s251 = smul.u32 8, %s13
      %p252 = scmp.lt.s32.totalorder %s251, 15
      %s253 = scalar_select %p252, %s251, 15
      %s254 = smul.addr %s253, 8
      %s255 = scalar_lea.vmem %s2, %s254
      // Predicated region
      $region29: #{tpu_custom_call.1} parent=27 // pred_check
        %p256 = pneg %p78
      $region30: #{tpu_custom_call.1} parent=27 // pred_check_branch
        %258 = sbr.rel (%p256) target = $region32
      $region31: #{tpu_custom_call.1} parent=27 // pred_region
        %s259 = smul.u32 8, %s13
      $region32: #{tpu_custom_call.1} parent=27 // pred_fallthru
        _
    $region28: #{tpu_custom_call.1} parent=5 // pred_fallthru
      _
    %p260 = scmp.le.s32.totalorder 2, %s8
    // Predicated region
    $region33: #{tpu_custom_call.1} parent=5 // pred_check
      %p261 = pneg %p260
    $region34: #{tpu_custom_call.1} parent=5 // pred_check_branch
      %263 = sbr.rel (%p261) target = $region36
    $region35: #{tpu_custom_call.1} parent=5 // pred_region
      %s264 = ssub.s32 %s8, 2
      // Predicated region
      $region37: #{tpu_custom_call.1} parent=35 // pred_check
        %p265 = pneg %p84
      $region38: #{tpu_custom_call.1} parent=35 // pred_check_branch
        %267 = sbr.rel (%p265) target = $region40
      $region39: #{tpu_custom_call.1} parent=35 // pred_region
        %s268 = smul.u32 8, %s14
        %p269 = scmp.lt.s32.totalorder %s268, 15
        %s270 = scalar_select %p269, %s268, 15
        %s271 = smul.addr %s270, 8
        %s272 = scalar_lea.vmem %s2, %s271
      $region40: #{tpu_custom_call.1} parent=35 // pred_fallthru
        _
    $region36: #{tpu_custom_call.1} parent=5 // pred_fallthru
      _
  $region6: #{tpu_custom_call.1} parent=0 // loop_footer
    %s12 = sadd.s32 1, %s8
  $region7: #{tpu_custom_call.1} parent=0 // loop_footer_branch
    %7 = sbr.rel target = $region3
  $region8: #{tpu_custom_call.1} parent=0 // loop_exit
    _

</llo_original>
